<compile_context>
chip_gen: v7x
topology: tpu7x:2x2x1
jax: 0.10.0
libtpu: 0.0.40
codegen_flags: <defaults>
</compile_context>

<pallas_src>
import jax
import jax.numpy as jnp
from jax.experimental import pallas as pl
from jax.experimental.pallas import tpu as pltpu

EPS = 1e-6


def _round_up(n, m):
    return (n + m - 1) // m * m


def sublayer_conn_kernel(x_ref, xres_ref, gamma_ref, beta_ref, wT_ref, b_ref, o_ref):
    # x_ref:    (tm, D)   full-feature tile -> LayerNorm statistics (f32)
    # xres_ref: (tm, tn)  residual slice matching this output tile
    # wT_ref:   (D, tn)   bf16 slice of W^T (already transposed + cast outside)
    x = x_ref[...].astype(jnp.float32)
    D = x.shape[-1]

    # --- LayerNorm (f32; unbiased std, eps added to std) ---
    mean = jnp.mean(x, axis=-1, keepdims=True)
    centered = x - mean
    var_unbiased = jnp.sum(centered * centered, axis=-1, keepdims=True) / (D - 1)
    std = jnp.sqrt(var_unbiased)
    inv = pl.reciprocal(std + EPS, approx=True)      # EUP slot, ~free next to VPU/MXU
    normed = gamma_ref[...] * (centered * inv) + beta_ref[...]

    # --- sublayer: Linear  y = LN(x) @ W^T + b  (bf16 MXU feed, f32 accumulate) ---
    y = jnp.dot(normed.astype(jnp.bfloat16), wT_ref[...],
                preferred_element_type=jnp.float32) + b_ref[...]

    # --- dropout (eval mode -> identity) + residual ---
    o_ref[...] = (xres_ref[...].astype(jnp.float32) + y).astype(o_ref.dtype)


def prepare_params(gamma, beta, W, b):
    """One-time parameter prep: reshape, transpose W (out,in)->(in,out), bf16 weight.

    Keeps the (D,D) transpose + cast out of the per-call hot path.
    """
    D = gamma.shape[0]
    return (gamma.reshape(1, D).astype(jnp.float32),
            beta.reshape(1, D).astype(jnp.float32),
            W.T.astype(jnp.bfloat16),
            b.reshape(1, D).astype(jnp.float32))


def sublayer_conn(x, gamma2, beta2, wT, b2, *, tm=256, tn=None):
    """x: (rows, D). gamma2/beta2/b2: (1, D) f32. wT: (D, D) bf16 (= W transposed)."""
    rows, D = x.shape

    # Row tiling: clamp for small inputs, pad rows to a tile multiple.
    tm = min(tm, _round_up(rows, 8))
    rows_pad = _round_up(rows, tm)
    x_in = jnp.pad(x, ((0, rows_pad - rows), (0, 0))) if rows_pad != rows else x

    # Output-feature tiling for the weight: resident while small, streamed in
    # (D, tn) slices (extra grid axis) when W^T alone would crowd 64 MiB VMEM (v7x).
    if tn is None:
        if D % 512 == 0 and D * D * wT.dtype.itemsize > (16 << 20):
            tn = 512
        else:
            tn = D
    assert D % tn == 0
    n_blocks = D // tn
    grid = (rows_pad // tm, n_blocks)

    # Double-buffered VMEM budget -> explicit scoped limit with headroom.
    bx = x.dtype.itemsize
    vmem_bytes = (2 * tm * D * bx          # x (LN) tiles
                  + 2 * tm * tn * bx       # x (residual) tiles
                  + 2 * tm * tn * bx       # output tiles
                  + 2 * D * tn * wT.dtype.itemsize   # weight slices (bf16)
                  + 8 * D * 4)             # gamma / beta / bias
    vmem_limit = min(max(int(1.5 * vmem_bytes) + (2 << 20), 32 << 20), 64 << 20)

    cost = pl.CostEstimate(
        flops=2 * rows_pad * D * D,
        transcendentals=rows_pad * n_blocks,
        bytes_accessed=3 * rows_pad * D * bx + D * D * wT.dtype.itemsize,
    )

    out = pl.pallas_call(
        sublayer_conn_kernel,
        out_shape=jax.ShapeDtypeStruct((rows_pad, D), x.dtype),
        grid_spec=pltpu.PrefetchScalarGridSpec(
            num_scalar_prefetch=0,
            grid=grid,
            in_specs=[
                pl.BlockSpec((tm, D), lambda i, j: (i, 0)),    # x, full width (LN)
                pl.BlockSpec((tm, tn), lambda i, j: (i, j)),   # x, residual slice
                pl.BlockSpec((1, D), lambda i, j: (0, 0)),     # gamma
                pl.BlockSpec((1, D), lambda i, j: (0, 0)),     # beta
                pl.BlockSpec((D, tn), lambda i, j: (0, j)),    # W^T slice (bf16)
                pl.BlockSpec((1, tn), lambda i, j: (0, j)),    # bias slice
            ],
            out_specs=pl.BlockSpec((tm, tn), lambda i, j: (i, j)),
        ),
        compiler_params=pltpu.CompilerParams(
            dimension_semantics=("parallel", "parallel"),
            vmem_limit_bytes=vmem_limit,
        ),
        cost_estimate=cost,
    )(x_in, x_in, gamma2, beta2, wT, b2)

    return out[:rows] if rows_pad != rows else out


def sublayer_conn_ref(x, gamma, beta, W, b):
    """Pure-JAX f32 reference of the same forward (eval-mode dropout)."""
    mean = jnp.mean(x, axis=-1, keepdims=True)
    centered = x - mean
    var_unbiased = jnp.sum(centered ** 2, axis=-1, keepdims=True) / (x.shape[-1] - 1)
    std = jnp.sqrt(var_unbiased)
    normed = gamma * (centered / (std + EPS)) + beta
    y = normed @ W.T + b
    return x + y


if __name__ == "__main__":
    batch, seq, size = 2, 8, 32
    key = jax.random.PRNGKey(0)
    kx, kw, kb = jax.random.split(key, 3)

    x = jax.random.normal(kx, (batch, seq, size), dtype=jnp.float32)

    # Deterministic parameters.
    gamma = jnp.ones((size,), dtype=jnp.float32)                        # LayerNorm a_2
    beta = jnp.zeros((size,), dtype=jnp.float32)                        # LayerNorm b_2
    W = jax.random.normal(kw, (size, size), dtype=jnp.float32) * 0.05   # Linear weight (out, in)
    b = jax.random.normal(kb, (size,), dtype=jnp.float32) * 0.05        # Linear bias

    params = prepare_params(gamma, beta, W, b)   # W^T + bf16 cast done once

    x2d = x.reshape(batch * seq, size)
    out2d = sublayer_conn(x2d, *params)
    out = out2d.reshape(batch, seq, size)
    jax.block_until_ready(out)

    ref = sublayer_conn_ref(x2d, gamma, beta, W, b).reshape(batch, seq, size)
    # Tolerance is loosened vs the previous all-f32 kernel: it now covers the
    # bf16 MXU operand cast and the approximate EUP reciprocal in LayerNorm.
    assert jnp.allclose(out, ref, atol=5e-2, rtol=5e-2), "mismatch vs reference"

    print("KERNEL_OK")
</pallas_src>

<mosaic_0001>
module attributes {stable_mosaic.version = 11 : i64} {
  func.func @sublayer_conn_kernel(%arg0: i32, %arg1: i32, %arg2: memref<16x32xf32, #tpu.memory_space<vmem>>, %arg3: memref<16x32xf32, #tpu.memory_space<vmem>>, %arg4: memref<1x32xf32, #tpu.memory_space<vmem>>, %arg5: memref<1x32xf32, #tpu.memory_space<vmem>>, %arg6: memref<32x32xbf16, #tpu.memory_space<vmem>>, %arg7: memref<1x32xf32, #tpu.memory_space<vmem>>, %arg8: memref<16x32xf32, #tpu.memory_space<vmem>>) attributes {dimension_semantics = [#tpu.dimension_semantics<parallel>, #tpu.dimension_semantics<parallel>], iteration_bounds = array<i64: 1, 1>, scalar_prefetch = 0 : i64, scratch_operands = 0 : i64, tpu.core_type = #tpu.core_type<tc>, window_params = [{transform_indices = @transform_0, window_bounds = array<i64: 16, 32>}, {transform_indices = @transform_1, window_bounds = array<i64: 16, 32>}, {pipeline_mode = #tpu.pipeline_mode<synchronous>, transform_indices = @transform_2, window_bounds = array<i64: 1, 32>}, {pipeline_mode = #tpu.pipeline_mode<synchronous>, transform_indices = @transform_3, window_bounds = array<i64: 1, 32>}, {transform_indices = @transform_4, window_bounds = array<i64: 32, 32>}, {transform_indices = @transform_5, window_bounds = array<i64: 1, 32>}, {transform_indices = @transform_6, window_bounds = array<i64: 16, 32>}]} {
    %c0 = arith.constant 0 : index
    %c0_0 = arith.constant 0 : index
    %0 = vector.load %arg2[%c0, %c0_0] : memref<16x32xf32, #tpu.memory_space<vmem>>, vector<16x32xf32>
    %cst = arith.constant dense<0.000000e+00> : vector<16xf32>
    %1 = vector.multi_reduction <add>, %0, %cst [1] : vector<16x32xf32> to vector<16xf32>
    %2 = vector.shape_cast %1 : vector<16xf32> to vector<16x1xf32>
    %cst_1 = arith.constant 3.200000e+01 : f32
    %3 = vector.broadcast %cst_1 : f32 to vector<16x1xf32>
    %4 = arith.divf %2, %3 : vector<16x1xf32>
    %5 = vector.broadcast %4 : vector<16x1xf32> to vector<16x32xf32>
    %6 = arith.subf %0, %5 : vector<16x32xf32>
    %7 = arith.mulf %6, %6 : vector<16x32xf32>
    %cst_2 = arith.constant dense<0.000000e+00> : vector<16xf32>
    %8 = vector.multi_reduction <add>, %7, %cst_2 [1] : vector<16x32xf32> to vector<16xf32>
    %9 = vector.shape_cast %8 : vector<16xf32> to vector<16x1xf32>
    %cst_3 = arith.constant 3.100000e+01 : f32
    %10 = vector.broadcast %cst_3 : f32 to vector<16x1xf32>
    %11 = arith.divf %9, %10 : vector<16x1xf32>
    %12 = math.sqrt %11 : vector<16x1xf32>
    %cst_4 = arith.constant 9.99999997E-7 : f32
    %13 = vector.broadcast %cst_4 : f32 to vector<16x1xf32>
    %14 = arith.addf %12, %13 : vector<16x1xf32>
    %15 = tpu.reciprocal %14 {approx = true} : vector<16x1xf32> -> vector<16x1xf32>
    %c0_5 = arith.constant 0 : index
    %c0_6 = arith.constant 0 : index
    %16 = vector.load %arg4[%c0_5, %c0_6] : memref<1x32xf32, #tpu.memory_space<vmem>>, vector<1x32xf32>
    %17 = vector.broadcast %15 : vector<16x1xf32> to vector<16x32xf32>
    %18 = arith.mulf %6, %17 : vector<16x32xf32>
    %19 = vector.broadcast %16 : vector<1x32xf32> to vector<16x32xf32>
    %20 = arith.mulf %19, %18 : vector<16x32xf32>
    %c0_7 = arith.constant 0 : index
    %c0_8 = arith.constant 0 : index
    %21 = vector.load %arg5[%c0_7, %c0_8] : memref<1x32xf32, #tpu.memory_space<vmem>>, vector<1x32xf32>
    %22 = vector.broadcast %21 : vector<1x32xf32> to vector<16x32xf32>
    %23 = arith.addf %20, %22 : vector<16x32xf32>
    %24 = arith.truncf %23 : vector<16x32xf32> to vector<16x32xbf16>
    %c0_9 = arith.constant 0 : index
    %c0_10 = arith.constant 0 : index
    %25 = vector.load %arg6[%c0_9, %c0_10] : memref<32x32xbf16, #tpu.memory_space<vmem>>, vector<32x32xbf16>
    %cst_11 = arith.constant dense<0.000000e+00> : vector<16x32xf32>
    %26 = tpu.matmul %24, %25, %cst_11 {dimension_numbers = #tpu.dot_dimension_numbers<[1], [0], [0], [1], [0, 0, 1, 1], [], []>} : vector<16x32xbf16>, vector<32x32xbf16>, vector<16x32xf32> -> vector<16x32xf32>
    %c0_12 = arith.constant 0 : index
    %c0_13 = arith.constant 0 : index
    %27 = vector.load %arg7[%c0_12, %c0_13] : memref<1x32xf32, #tpu.memory_space<vmem>>, vector<1x32xf32>
    %28 = vector.broadcast %27 : vector<1x32xf32> to vector<16x32xf32>
    %29 = arith.addf %26, %28 : vector<16x32xf32>
    %c0_14 = arith.constant 0 : index
    %c0_15 = arith.constant 0 : index
    %30 = vector.load %arg3[%c0_14, %c0_15] : memref<16x32xf32, #tpu.memory_space<vmem>>, vector<16x32xf32>
    %31 = arith.addf %30, %29 : vector<16x32xf32>
    %c0_16 = arith.constant 0 : index
    %c0_17 = arith.constant 0 : index
    %32 = vector.load %arg8[%c0_16, %c0_17] : memref<16x32xf32, #tpu.memory_space<vmem>>, vector<16x32xf32>
    tpu.vector_store %arg8[%c0_16, %c0_17], %31 {strides = array<i32>} : memref<16x32xf32, #tpu.memory_space<vmem>>, vector<16x32xf32>,
    return
  }
  func.func @transform_0(%arg0: i32, %arg1: i32) -> (i32, i32) {
    %c0_i32 = arith.constant 0 : i32
    %c0_i32_0 = arith.constant 0 : i32
    return %arg0, %c0_i32 : i32, i32
  }
  func.func @transform_1(%arg0: i32, %arg1: i32) -> (i32, i32) {
    %c0_i32 = arith.constant 0 : i32
    return %arg0, %arg1 : i32, i32
  }
  func.func @transform_2(%arg0: i32, %arg1: i32) -> (i32, i32) {
    %c0_i32 = arith.constant 0 : i32
    %c0_i32_0 = arith.constant 0 : i32
    %c0_i32_1 = arith.constant 0 : i32
    return %c0_i32, %c0_i32_0 : i32, i32
  }
  func.func @transform_3(%arg0: i32, %arg1: i32) -> (i32, i32) {
    %c0_i32 = arith.constant 0 : i32
    %c0_i32_0 = arith.constant 0 : i32
    %c0_i32_1 = arith.constant 0 : i32
    return %c0_i32, %c0_i32_0 : i32, i32
  }
  func.func @transform_4(%arg0: i32, %arg1: i32) -> (i32, i32) {
    %c0_i32 = arith.constant 0 : i32
    %c0_i32_0 = arith.constant 0 : i32
    return %c0_i32, %arg1 : i32, i32
  }
  func.func @transform_5(%arg0: i32, %arg1: i32) -> (i32, i32) {
    %c0_i32 = arith.constant 0 : i32
    %c0_i32_0 = arith.constant 0 : i32
    return %c0_i32, %arg1 : i32, i32
  }
  func.func @transform_6(%arg0: i32, %arg1: i32) -> (i32, i32) {
    %c0_i32 = arith.constant 0 : i32
    return %arg0, %arg1 : i32, i32
  }
}

</mosaic_0001>

<llo_original>
// kernel: tpu_custom_call.1
$region0: #{tpu_custom_call.1}
  #allocation0 [shape = 'u32[]', space=smem, size = 0x4, offset = 0x4, fixed_abs, tag = 'smem constant byte address 0x4 - core index']
  #allocation1 [shape = 'u32[144,128]{1,0:T(1,128)}', space=vmem, size = 0x12000, scoped, tag = 'internal scratch']
  %s0 = inlined_call_operand.hbm [shape: f32[16,32], index: 0, kind: input, shape index: {}]
  %s1 = inlined_call_operand.hbm [shape: f32[16,32], index: 1, kind: input, shape index: {}]
  %s2 = inlined_call_operand.vmem [shape: f32[1,32], index: 2, kind: input, shape index: {}]
  %s3 = inlined_call_operand.vmem [shape: f32[1,32], index: 3, kind: input, shape index: {}]
  %s4 = inlined_call_operand.hbm [shape: bf16[32,32], index: 4, kind: input, shape index: {}]
  %s5 = inlined_call_operand.vmem [shape: f32[1,32], index: 5, kind: input, shape index: {}]
  %s6 = inlined_call_operand.hbm [shape: f32[16,32], index: 6, kind: output, shape index: {}]
  %s7 = sld [smem:[#allocation0]]
  $region46: #{tpu_custom_call.1} parent=0
    _
  %s9 = ssub.s32 1, %s7
  %s10 = scalar_select 0, %s9, %s7
  $region1: #{tpu_custom_call.1} parent=0
    #allocation2 [shape = 'u8[8192]{0}', space=vmem, size = 0x2000, scoped, tag = 'input window, operand 0, single buffered']
    #allocation3 [shape = 's32[1]{0}', space=sflag, size = 0x4, scoped, tag = 'scoped memory for tpu_custom_call.1']
    #allocation4 [shape = 's32[1]{0}', space=sflag, size = 0x4, scoped, tag = 'scoped memory for tpu_custom_call.1']
    #allocation5 [shape = 'u8[8192]{0}', space=vmem, size = 0x2000, scoped, tag = 'input window, operand 1, single buffered']
    #allocation6 [shape = 's32[1]{0}', space=sflag, size = 0x4, scoped, tag = 'scoped memory for tpu_custom_call.1']
    #allocation7 [shape = 'u8[8192]{0}', space=vmem, size = 0x2000, scoped, tag = 'input window, operand 4, single buffered']
    #allocation8 [shape = 'u8[8192]{0}', space=vmem, size = 0x2000, scoped, tag = 'output window, operand 0, single buffered']
    %11 = vsyncpa [#allocation3], 0
    %12 = vsyncpa [#allocation6], 0
    %13 = vsyncpa [#allocation4], 0
    // Predicated region
    $region2: #{tpu_custom_call.1} parent=1 // pred_check
      _
    $region3: #{tpu_custom_call.1} parent=1 // pred_check_branch
      %15 = sbr.rel (0) target = $region5
    $region4: #{tpu_custom_call.1} parent=1 // pred_region
      %s17 = ssub.s32 256, 256
      %18 = vsyncadd [#allocation3], %s17
      %s19 = sshll.u32 [#allocation2], 4
      %s20 = int_to_ptr.vmem [resolvable:$true] %s19
      %25 = dma.hbm_to_vmem [thread:$0]  %s0, 256, %s20, [#allocation3], 128, 128, 8
    $region5: #{tpu_custom_call.1} parent=1 // pred_fallthru
      _
    // Predicated region
    $region6: #{tpu_custom_call.1} parent=1 // pred_check
      _
    $region7: #{tpu_custom_call.1} parent=1 // pred_check_branch
      %27 = sbr.rel (0) target = $region9
    $region8: #{tpu_custom_call.1} parent=1 // pred_region
      %s29 = ssub.s32 256, 256
      %30 = vsyncadd [#allocation6], %s29
      %s31 = sshll.u32 [#allocation5], 4
      %s32 = int_to_ptr.vmem [resolvable:$true] %s31
      %37 = dma.hbm_to_vmem [thread:$0]  %s1, 256, %s32, [#allocation6], 128, 128, 8
    $region9: #{tpu_custom_call.1} parent=1 // pred_fallthru
      _
    // Predicated region
    $region10: #{tpu_custom_call.1} parent=1 // pred_check
      _
    $region11: #{tpu_custom_call.1} parent=1 // pred_check_branch
      %39 = sbr.rel (0) target = $region13
    $region12: #{tpu_custom_call.1} parent=1 // pred_region
      _
    $region13: #{tpu_custom_call.1} parent=1 // pred_fallthru
      _
    // Predicated region
    $region14: #{tpu_custom_call.1} parent=1 // pred_check
      _
    $region15: #{tpu_custom_call.1} parent=1 // pred_check_branch
      %41 = sbr.rel (0) target = $region17
    $region16: #{tpu_custom_call.1} parent=1 // pred_region
      _
    $region17: #{tpu_custom_call.1} parent=1 // pred_fallthru
      _
    // Predicated region
    $region18: #{tpu_custom_call.1} parent=1 // pred_check
      _
    $region19: #{tpu_custom_call.1} parent=1 // pred_check_branch
      %43 = sbr.rel (0) target = $region21
    $region20: #{tpu_custom_call.1} parent=1 // pred_region
      %s45 = ssub.s32 256, 256
      %46 = vsyncadd [#allocation6], %s45
      %s47 = sshll.u32 [#allocation7], 4
      %s48 = int_to_ptr.vmem [resolvable:$true] %s47
      %53 = dma.hbm_to_vmem [thread:$0]  %s4, 256, %s48, [#allocation6], 64, 64, 4
    $region21: #{tpu_custom_call.1} parent=1 // pred_fallthru
      _
    // Predicated region
    $region22: #{tpu_custom_call.1} parent=1 // pred_check
      _
    $region23: #{tpu_custom_call.1} parent=1 // pred_check_branch
      %55 = sbr.rel (0) target = $region25
    $region24: #{tpu_custom_call.1} parent=1 // pred_region
      _
    $region25: #{tpu_custom_call.1} parent=1 // pred_fallthru
      _
    // Predicated region
    $region26: #{tpu_custom_call.1} parent=1 // pred_check
      _
    $region27: #{tpu_custom_call.1} parent=1 // pred_check_branch
      %57 = sbr.rel (0) target = $region29
    $region28: #{tpu_custom_call.1} parent=1 // pred_region
      %58 = dma.done [#allocation3], 256
    $region29: #{tpu_custom_call.1} parent=1 // pred_fallthru
      _
    // Predicated region
    $region30: #{tpu_custom_call.1} parent=1 // pred_check
      _
    $region31: #{tpu_custom_call.1} parent=1 // pred_check_branch
      %60 = sbr.rel (0) target = $region33
    $region32: #{tpu_custom_call.1} parent=1 // pred_region
      %61 = dma.done [#allocation6], 256
    $region33: #{tpu_custom_call.1} parent=1 // pred_fallthru
      _
    // Predicated region
    $region34: #{tpu_custom_call.1} parent=1 // pred_check
      _
    $region35: #{tpu_custom_call.1} parent=1 // pred_check_branch
      %63 = sbr.rel (0) target = $region37
    $region36: #{tpu_custom_call.1} parent=1 // pred_region
      %64 = dma.done [#allocation6], 256
    $region37: #{tpu_custom_call.1} parent=1 // pred_fallthru
      _
    %v66 = vld [vmem:[#allocation2] sm:$0xff]
    %v67 = vld [vmem:[#allocation2 + $0x8] sm:$0xff]
    %vm68 = vcmask 261120
    %v69 = vsel %vm68, %v66, 0.0
    %70 = vadd.xlane.f32.xlu0 %v69
    %v71 = vpop.xlane.xlu0 %70
    %v72 = vsel %vm68, %v67, 0.0
    %73 = vadd.xlane.f32.xlu0 %v72
    %v74 = vpop.xlane.xlu0 %73
    %v75 = vrcp.pop 32.0
    %v76 = vmul.f32 %v71, %v75
    %v77 = vmul.f32 %v74, %v75
    %v78 = vsub.f32 %v66, %v76
    %v79 = vsub.f32 %v67, %v77
    %v80 = vmul.f32 %v78, %v78
    %v81 = vmul.f32 %v79, %v79
    %v82 = vsel %vm68, %v80, 0.0
    %83 = vadd.xlane.f32.xlu0 %v82
    %v84 = vpop.xlane.xlu0 %83
    %v85 = vsel %vm68, %v81, 0.0
    %86 = vadd.xlane.f32.xlu0 %v85
    %v87 = vpop.xlane.xlu0 %86
    %v88 = vrcp.pop 31.0
    %v89 = vmul.f32 %v84, %v88
    %v90 = vmul.f32 %v87, %v88
    %v91 = vrsqrt.pop %v89
    %v92 = vmul.f32 %v89, %v91
    %vm93 = vcmp.eq.f32.partialorder %v89, inf
    %v94 = vsel %vm93, %v89, %v92
    %vm95 = vcmp.eq.f32.partialorder %v89, 0.0
    %v96 = vand.u32 %v89, 2147483648
    %v97 = vsel %vm95, %v96, %v94
    %v98 = vrsqrt.pop %v90
    %v99 = vmul.f32 %v90, %v98
    %vm100 = vcmp.eq.f32.partialorder %v90, inf
    %v101 = vsel %vm100, %v90, %v99
    %vm102 = vcmp.eq.f32.partialorder %v90, 0.0
    %v103 = vand.u32 %v90, 2147483648
    %v104 = vsel %vm102, %v103, %v101
    %v105 = vadd.f32 %v97, 1e-06
    %v106 = vadd.f32 %v104, 1e-06
    %v107 = vrcp.pop %v105
    %v108 = vrcp.pop %v106
    %v109 = vld [vmem:[%s2] sm:$0x1]
    %v110 = vmul.f32 %v78, %v107
    %v111 = vmul.f32 %v79, %v108
    %v113 = vlaneseq
    %v114 = vshrl.u32 %v113, 7
    %v115 = vsub.s32 0, %v114
    %v116 = vrot.slane %v109, %v115
    %v118 = vmul.f32 %v116, %v110
    %v119 = vmul.f32 %v116, %v111
    %v120 = vld [vmem:[%s3] sm:$0x1]
    %v122 = vlaneseq
    %v123 = vshrl.u32 %v122, 7
    %v124 = vsub.s32 0, %v123
    %v125 = vrot.slane %v120, %v124
    %v127 = vadd.f32 %v118, %v125
    %v128 = vadd.f32 %v119, %v125
    %v129 = vpack.c.bf16 %v128, %v127
    %v130 = vld [vmem:[#allocation7] sm:$0xf]
    %v131 = vld [vmem:[#allocation7 + $0x4] sm:$0xf]
    %v132 = vld [vmem:[#allocation7 + $0x8] sm:$0xf]
    %v133 = vld [vmem:[#allocation7 + $0xc] sm:$0xf]
    %v134 = vld [vmem:[%s5] sm:$0x1]
    %v136 = vlaneseq
    %v137 = vshrl.u32 %v136, 7
    %v138 = vsub.s32 0, %v137
    %v139 = vrot.slane %v134, %v138
    %v145 = vunpack.c.l.b16 %v130
    %v146 = vunpack.c.l.b16 %v131
    %v147 = vunpack.c.l.b16 %v132
    %v148 = vunpack.c.l.b16 %v133
    %v149 = vpack.c.b16 %v146, %v145
    %v150 = vpack.c.b16 %v148, %v147
    %v154 = vsel %vm68, %v129, 0
    %156 = vmatprep.subr.bf16.mxu0 0
    %157 = vmatpush1.bf16.msra.mxu0 %v149
    %158 = vmatprep.subr.bf16.mxu0 0
    %159 = vmatpush1.bf16.msra.mxu0 %v150
    %160 = vmatprep.subr.bf16.mxu0 0
    %161 = vmatpush1.bf16.msra.mxu0 0
    %162 = vmatprep.subr.bf16.mxu0 0
    %163 = vmatpush1.bf16.msra.mxu0 0
    %164 = vmatprep.subr.bf16.mxu0 0
    %165 = vmatpush1.bf16.msra.mxu0 0
    %166 = vmatprep.subr.bf16.mxu0 0
    %167 = vmatpush1.bf16.msra.mxu0 0
    %168 = vmatprep.subr.bf16.mxu0 0
    %169 = vmatpush1.bf16.msra.mxu0 0
    %170 = vmatprep.subr.bf16.mxu0 0
    %171 = vmatpush1.bf16.msra.mxu0 0
    %172 = vmatprep.subr.bf16.mxu0 0
    %173 = vmatpush1.bf16.msra.mxu0 0
    %174 = vmatprep.subr.bf16.mxu0 0
    %175 = vmatpush1.bf16.msra.mxu0 0
    %176 = vmatprep.subr.bf16.mxu0 0
    %177 = vmatpush1.bf16.msra.mxu0 0
    %178 = vmatprep.subr.bf16.mxu0 0
    %179 = vmatpush1.bf16.msra.mxu0 0
    %180 = vmatprep.subr.bf16.mxu0 0
    %181 = vmatpush1.bf16.msra.mxu0 0
    %182 = vmatprep.subr.bf16.mxu0 0
    %183 = vmatpush1.bf16.msra.mxu0 0
    %184 = vmatprep.subr.bf16.mxu0 0
    %185 = vmatpush1.bf16.msra.mxu0 0
    %186 = vmatprep.subr.bf16.mxu0 0
    %187 = vmatpush1.bf16.msra.mxu0 0
    %188 = vmatprep.mubr.bf16.mxu0 0
    %189 = vmatmul.mubr.bf16.gmra.mrb[0].mxu0 %v154
    %v190 = vpop.f32.mrb[0].mxu0
    %v191 = vadd.f32 %v139, %v190
    %v192 = vpop.f32.mrb[0].mxu0
    %v193 = vpop.f32.mrb[0].mxu0
    %v194 = vadd.f32 %v139, %v193
    %v195 = vpop.f32.mrb[0].mxu0
    %196 = vdwg.mxu0
    %v197 = vld [vmem:[#allocation5] sm:$0xff]
    %v198 = vld [vmem:[#allocation5 + $0x8] sm:$0xff]
    %v199 = vadd.f32 %v197, %v191
    %v200 = vadd.f32 %v198, %v194
    %201 = vst.msk [vmem:[#allocation8] sm:$0xff] %vm68, %v199
    %202 = vst.msk [vmem:[#allocation8 + $0x8] sm:$0xff] %vm68, %v200
    // Predicated region
    $region38: #{tpu_custom_call.1} parent=1 // pred_check
      _
    $region39: #{tpu_custom_call.1} parent=1 // pred_check_branch
      %204 = sbr.rel (0) target = $region41
    $region40: #{tpu_custom_call.1} parent=1 // pred_region
      %s206 = ssub.s32 256, 256
      %207 = vsyncadd [#allocation4], %s206
      %s208 = sshll.u32 [#allocation8], 4
      %s209 = int_to_ptr.vmem [resolvable:$true] %s208
      %214 = dma.vmem_to_hbm [thread:$0]  %s209, 256, %s6, [#allocation4], 128, 128, 8
    $region41: #{tpu_custom_call.1} parent=1 // pred_fallthru
      _
    // Predicated region
    $region42: #{tpu_custom_call.1} parent=1 // pred_check
      _
    $region43: #{tpu_custom_call.1} parent=1 // pred_check_branch
      %216 = sbr.rel (0) target = $region45
    $region44: #{tpu_custom_call.1} parent=1 // pred_region
      %217 = dma.done [#allocation4], 256
    $region45: #{tpu_custom_call.1} parent=1 // pred_fallthru
      _
    %218 = vsyncpa [#allocation3], 1
    %219 = vsyncpa [#allocation6], 1
    %220 = vsyncpa [#allocation4], 1

</llo_original>
